<compile_context>
chip_gen: v7x
topology: tpu7x:2x2x1
jax: 0.10.0
libtpu: 0.0.40
codegen_flags: <defaults>
</compile_context>

<pallas_src>
import functools
import math

import jax
import jax.numpy as jnp
import numpy as np
from jax import lax
from jax.experimental import pallas as pl
from jax.experimental.pallas import tpu as pltpu


# ----------------------------------------------------------------------------
# Tiling helpers
# ----------------------------------------------------------------------------
def _round_up(x, m):
    return (x + m - 1) // m * m


def _choose_block(dim, target, align):
    """Return (block, padded_dim).

    block divides padded_dim and is either a multiple of `align` or equal to the
    full (unpadded) dim.  Never silently falls back to a huge full-dim block for
    large non-divisible axes: those get padded instead.
    """
    if dim <= target:
        return dim, dim                       # full-dim block is always legal
    if dim % target == 0:
        return target, dim
    pad = _round_up(dim, align)
    start = target - (target % align)
    for blk in range(start, align - 1, -align):
        if pad % blk == 0:
            return blk, pad
    return align, pad


def _heads_per_block(num_heads, head_dim):
    """Pack heads so the channel block width is lane-dense (mult of 128 or full C)."""
    if num_heads * head_dim <= 128:
        return num_heads
    for hpb in range(1, num_heads + 1):
        if num_heads % hpb == 0 and (hpb * head_dim) % 128 == 0 and hpb * head_dim <= 512:
            return hpb
    return num_heads  # full channel dim (always a legal block width)


# ----------------------------------------------------------------------------
# Kernel 1: tiled linear  y = x @ W + b    (W is (in, out), i.e. torch W.T)
# ----------------------------------------------------------------------------
def _linear_kernel(x_ref, w_ref, b_ref, o_ref, acc_ref):
    # Fold the bias into the accumulator init (no epilogue add).
    @pl.when(pl.program_id(2) == 0)
    def _():
        acc_ref[...] = jnp.broadcast_to(
            b_ref[...].astype(jnp.float32), acc_ref.shape)

    acc_ref[...] += jnp.dot(
        x_ref[...].astype(jnp.bfloat16),
        w_ref[...].astype(jnp.bfloat16),
        preferred_element_type=jnp.float32)

    @pl.when(pl.program_id(2) == pl.num_programs(2) - 1)
    def _():
        o_ref[...] = acc_ref[...].astype(o_ref.dtype)


def linear(x, w, b, *, out_dtype=None, tm=256, tn=256, tk=512):
    R, K = x.shape
    K2, N = w.shape
    assert K == K2
    out_dtype = out_dtype or x.dtype

    bm, Rp = _choose_block(R, tm, 8)
    bn, Np = _choose_block(N, tn, 128)
    bk, Kp = _choose_block(K, tk, 128)

    if Rp != R or Kp != K:
        x = jnp.pad(x, ((0, Rp - R), (0, Kp - K)))
    if Kp != K or Np != N:
        w = jnp.pad(w, ((0, Kp - K), (0, Np - N)))
    b2 = b.reshape(1, N)
    if Np != N:
        b2 = jnp.pad(b2, ((0, 0), (0, Np - N)))

    out = pl.pallas_call(
        _linear_kernel,
        out_shape=jax.ShapeDtypeStruct((Rp, Np), out_dtype),
        grid_spec=pltpu.PrefetchScalarGridSpec(
            num_scalar_prefetch=0,
            grid=(Rp // bm, Np // bn, Kp // bk),
            in_specs=[
                pl.BlockSpec((bm, bk), lambda i, j, k: (i, k)),
                pl.BlockSpec((bk, bn), lambda i, j, k: (k, j)),
                pl.BlockSpec((1, bn), lambda i, j, k: (0, j)),
            ],
            out_specs=pl.BlockSpec((bm, bn), lambda i, j, k: (i, j)),
            scratch_shapes=[pltpu.VMEM((bm, bn), jnp.float32)],
        ),
        compiler_params=pltpu.CompilerParams(
            dimension_semantics=("parallel", "parallel", "arbitrary"),
            vmem_limit_bytes=64 * 1024 * 1024),
    )(x, w, b2)

    if Rp != R or Np != N:
        out = out[:R, :N]
    return out


# ----------------------------------------------------------------------------
# Kernel 2: fused multi-head attention (flash-style online softmax)
#   grid = (B, head_groups, Nq tiles, Mkv tiles), KV reduction last ("arbitrary")
#   blocks stay in the native (B, seq, C) layout: the head-group axis picks the
#   channel slab, so no head split/merge transposes are needed in the wrapper.
# ----------------------------------------------------------------------------
def _mha_kernel(q_ref, k_ref, v_ref, o_ref, m_sc, l_sc, acc_sc, *,
                scale, hpb, head_dim, kv_len, block_kv, mask_kv):
    j = pl.program_id(3)

    @pl.when(j == 0)
    def _():
        m_sc[...] = jnp.full_like(m_sc, -jnp.inf)
        l_sc[...] = jnp.zeros_like(l_sc)
        acc_sc[...] = jnp.zeros_like(acc_sc)

    q = q_ref[0].astype(jnp.bfloat16)        # (bq, hpb*Dh)
    k = k_ref[0].astype(jnp.bfloat16)        # (bk, hpb*Dh)
    v = v_ref[0].astype(jnp.bfloat16)        # (bk, hpb*Dh)

    if mask_kv:
        col = j * block_kv + lax.broadcasted_iota(jnp.int32, (1, block_kv), 1)
        kv_valid = col < kv_len              # (1, bk)

    for hh in range(hpb):                    # static unroll over packed heads
        lo = hh * head_dim
        qh = q[:, lo:lo + head_dim]
        kh = k[:, lo:lo + head_dim]
        vh = v[:, lo:lo + head_dim]

        # scores (bq, bk): contract over head_dim, f32 accumulate on the MXU
        s = lax.dot_general(qh, kh, (((1,), (1,)), ((), ())),
                            preferred_element_type=jnp.float32) * scale
        if mask_kv:
            s = jnp.where(kv_valid, s, jnp.float32(-1e30))

        m_prev = m_sc[hh]
        m_new = jnp.maximum(m_prev, s.max(axis=-1, keepdims=True))
        alpha = jnp.exp(m_prev - m_new)
        p = jnp.exp(s - m_new)

        l_sc[hh] = alpha * l_sc[hh] + p.sum(axis=-1, keepdims=True)
        acc_sc[hh] = alpha * acc_sc[hh] + jnp.dot(
            p.astype(jnp.bfloat16), vh, preferred_element_type=jnp.float32)
        m_sc[hh] = m_new

    @pl.when(j == pl.num_programs(3) - 1)
    def _():
        outs = [acc_sc[hh] * pl.reciprocal(l_sc[hh], approx=True)
                for hh in range(hpb)]
        merged = outs[0] if hpb == 1 else jnp.concatenate(outs, axis=-1)
        o_ref[0] = merged.astype(o_ref.dtype)


def multi_head_attention(q, k, v, *, num_heads, scale, tq=256, tkv=256):
    """q: (B, N, C), k/v: (B, M, C)  ->  (B, N, C), no head transposes in HBM."""
    B, N, C = q.shape
    _, M, _ = k.shape
    H = num_heads
    Dh = C // H
    hpb = _heads_per_block(H, Dh)
    Hg = H // hpb
    W = hpb * Dh

    bq, Npad = _choose_block(N, tq, 8)
    bk, Mpad = _choose_block(M, tkv, 8)

    if Npad != N:
        q = jnp.pad(q, ((0, 0), (0, Npad - N), (0, 0)))
    mask_kv = Mpad != M
    if mask_kv:
        k = jnp.pad(k, ((0, 0), (0, Mpad - M), (0, 0)))
        v = jnp.pad(v, ((0, 0), (0, Mpad - M), (0, 0)))

    kernel = functools.partial(
        _mha_kernel, scale=scale, hpb=hpb, head_dim=Dh,
        kv_len=M, block_kv=bk, mask_kv=mask_kv)

    out = pl.pallas_call(
        kernel,
        out_shape=jax.ShapeDtypeStruct((B, Npad, C), q.dtype),
        grid_spec=pltpu.PrefetchScalarGridSpec(
            num_scalar_prefetch=0,
            grid=(B, Hg, Npad // bq, Mpad // bk),
            in_specs=[
                pl.BlockSpec((1, bq, W), lambda b, h, i, j: (b, i, h)),
                pl.BlockSpec((1, bk, W), lambda b, h, i, j: (b, j, h)),
                pl.BlockSpec((1, bk, W), lambda b, h, i, j: (b, j, h)),
            ],
            out_specs=pl.BlockSpec((1, bq, W), lambda b, h, i, j: (b, i, h)),
            scratch_shapes=[
                pltpu.VMEM((hpb, bq, 1), jnp.float32),    # running max
                pltpu.VMEM((hpb, bq, 1), jnp.float32),    # running denom
                pltpu.VMEM((hpb, bq, Dh), jnp.float32),   # output accumulator
            ],
        ),
        compiler_params=pltpu.CompilerParams(
            dimension_semantics=("parallel", "parallel", "parallel", "arbitrary"),
            vmem_limit_bytes=64 * 1024 * 1024),
    )(q, k, v)

    if Npad != N:
        out = out[:, :N, :]
    return out


# ----------------------------------------------------------------------------
# Module mirror
# ----------------------------------------------------------------------------
class Attention:
    """JAX/Pallas mirror of the PyTorch Attention module.

    Weights stored as (in, out) — the transpose of torch Linear.weight — so the
    forward pass is x @ W + b.
    """

    def __init__(self, dim, num_heads=8, qkv_bias=False, qk_scale=None,
                 attn_drop=0.0, proj_drop=0.0, *, key, dtype=jnp.float32):
        assert dim % num_heads == 0
        self.dim = dim
        self.num_heads = num_heads
        head_dim = dim // num_heads
        self.scale = qk_scale or head_dim ** (-0.5)
        # TODO(synk): attn_drop / proj_drop with p > 0 in training mode
        # (module defaults are 0.0 -> identity, which is what is implemented).
        self.attn_drop = attn_drop
        self.proj_drop = proj_drop

        kq, kk, kv, kp, kqb, kkb, kvb, kpb = jax.random.split(key, 8)
        bound = 1.0 / math.sqrt(dim)
        uni = lambda kk_, shape: jax.random.uniform(
            kk_, shape, dtype=dtype, minval=-bound, maxval=bound)

        self.q_w = uni(kq, (dim, dim))
        self.k_w = uni(kk, (dim, dim))
        self.v_w = uni(kv, (dim, dim))
        zero_b = jnp.zeros((dim,), dtype=dtype)
        self.q_b = uni(kqb, (dim,)) if qkv_bias else zero_b
        self.k_b = uni(kkb, (dim,)) if qkv_bias else zero_b
        self.v_b = uni(kvb, (dim,)) if qkv_bias else zero_b
        self.proj_w = uni(kp, (dim, dim))
        self.proj_b = uni(kpb, (dim,))

    def __call__(self, q, k, v):
        B, N, C = q.shape
        assert k.shape == v.shape
        _, M, _ = k.shape
        out_dtype = q.dtype

        # Projections emit bf16 so the attention kernel streams bf16 activations.
        qp = linear(q.reshape(B * N, C), self.q_w, self.q_b,
                    out_dtype=jnp.bfloat16).reshape(B, N, C)
        kp = linear(k.reshape(B * M, C), self.k_w, self.k_b,
                    out_dtype=jnp.bfloat16).reshape(B, M, C)
        vp = linear(v.reshape(B * M, C), self.v_w, self.v_b,
                    out_dtype=jnp.bfloat16).reshape(B, M, C)

        x = multi_head_attention(qp, kp, vp,
                                 num_heads=self.num_heads, scale=self.scale)

        x = linear(x.reshape(B * N, C), self.proj_w, self.proj_b,
                   out_dtype=out_dtype).reshape(B, N, C)
        return x  # proj_drop(p=0.0) is identity


# ----------------------------------------------------------------------------
# Pure-JAX f32 reference (for correctness check)
# ----------------------------------------------------------------------------
def _reference(q, k, v, mod: Attention):
    B, N, C = q.shape
    _, M, _ = k.shape
    H = mod.num_heads
    Dh = C // H
    qp = (q.reshape(B * N, C) @ mod.q_w + mod.q_b).reshape(B, N, H, Dh)
    kp = (k.reshape(B * M, C) @ mod.k_w + mod.k_b).reshape(B, M, H, Dh)
    vp = (v.reshape(B * M, C) @ mod.v_w + mod.v_b).reshape(B, M, H, Dh)
    attn = jnp.einsum('bnkc,bmkc->bknm', qp, kp) * mod.scale
    attn = jax.nn.softmax(attn, axis=-1)
    x = jnp.einsum('bknm,bmkc->bnkc', attn, vp).reshape(B, N, C)
    x = (x.reshape(B * N, C) @ mod.proj_w + mod.proj_b).reshape(B, N, C)
    return x


if __name__ == "__main__":
    key = jax.random.PRNGKey(0)
    kq, kk, kv, kparams = jax.random.split(key, 4)

    B, N, M, C, H = 2, 8, 8, 32, 4   # batch=2, seq=8, hidden=32, 4 heads
    q = jax.random.normal(kq, (B, N, C), dtype=jnp.float32)
    k = jax.random.normal(kk, (B, M, C), dtype=jnp.float32)
    v = jax.random.normal(kv, (B, M, C), dtype=jnp.float32)

    attn = Attention(dim=C, num_heads=H, qkv_bias=False, key=kparams)

    out = attn(q, k, v)
    out = jax.block_until_ready(out)
    assert out.shape == (B, N, C)

    ref = jax.block_until_ready(_reference(q, k, v, attn))
    np.testing.assert_allclose(np.asarray(out), np.asarray(ref),
                               rtol=3e-2, atol=3e-2)

    print("KERNEL_OK")
</pallas_src>

<mosaic_0001>
module attributes {stable_mosaic.version = 11 : i64} {
  func.func @_linear_kernel(%arg0: i32, %arg1: i32, %arg2: i32, %arg3: memref<16x32xf32, #tpu.memory_space<vmem>>, %arg4: memref<32x32xf32, #tpu.memory_space<vmem>>, %arg5: memref<1x32xf32, #tpu.memory_space<vmem>>, %arg6: memref<16x32xbf16, #tpu.memory_space<vmem>>, %arg7: memref<16x32xf32, #tpu.memory_space<vmem>>) attributes {dimension_semantics = [#tpu.dimension_semantics<parallel>, #tpu.dimension_semantics<parallel>, #tpu.dimension_semantics<arbitrary>], iteration_bounds = array<i64: 1, 1, 1>, scalar_prefetch = 0 : i64, scratch_operands = 1 : i64, tpu.core_type = #tpu.core_type<tc>, window_params = [{transform_indices = @transform_0, window_bounds = array<i64: 16, 32>}, {transform_indices = @transform_1, window_bounds = array<i64: 32, 32>}, {transform_indices = @transform_2, window_bounds = array<i64: 1, 32>}, {transform_indices = @transform_3, window_bounds = array<i64: 16, 32>}]} {
    %c0_i32 = arith.constant 0 : i32
    %0 = arith.cmpi eq, %arg2, %c0_i32 : i32
    %1 = arith.extui %0 : i1 to i32
    %c0_i32_0 = arith.constant 0 : i32
    %2 = arith.cmpi ne, %1, %c0_i32_0 : i32
    scf.if %2 {
      %c0_10 = arith.constant 0 : index
      %c0_11 = arith.constant 0 : index
      %14 = vector.load %arg5[%c0_10, %c0_11] : memref<1x32xf32, #tpu.memory_space<vmem>>, vector<1x32xf32>
      %15 = vector.shape_cast %14 : vector<1x32xf32> to vector<1x32xf32>
      %16 = vector.broadcast %15 : vector<1x32xf32> to vector<16x32xf32>
      %c0_12 = arith.constant 0 : index
      %c0_13 = arith.constant 0 : index
      %17 = vector.load %arg7[%c0_12, %c0_13] : memref<16x32xf32, #tpu.memory_space<vmem>>, vector<16x32xf32>
      tpu.vector_store %arg7[%c0_12, %c0_13], %16 {strides = array<i32>} : memref<16x32xf32, #tpu.memory_space<vmem>>, vector<16x32xf32>,
    } else {
    }
    %c0 = arith.constant 0 : index
    %c0_1 = arith.constant 0 : index
    %3 = vector.load %arg7[%c0, %c0_1] : memref<16x32xf32, #tpu.memory_space<vmem>>, vector<16x32xf32>
    %c0_2 = arith.constant 0 : index
    %c0_3 = arith.constant 0 : index
    %4 = vector.load %arg3[%c0_2, %c0_3] : memref<16x32xf32, #tpu.memory_space<vmem>>, vector<16x32xf32>
    %5 = arith.truncf %4 : vector<16x32xf32> to vector<16x32xbf16>
    %c0_4 = arith.constant 0 : index
    %c0_5 = arith.constant 0 : index
    %6 = vector.load %arg4[%c0_4, %c0_5] : memref<32x32xf32, #tpu.memory_space<vmem>>, vector<32x32xf32>
    %7 = arith.truncf %6 : vector<32x32xf32> to vector<32x32xbf16>
    %cst = arith.constant dense<0.000000e+00> : vector<16x32xf32>
    %8 = tpu.matmul %5, %7, %cst {dimension_numbers = #tpu.dot_dimension_numbers<[1], [0], [0], [1], [0, 0, 1, 1], [], []>} : vector<16x32xbf16>, vector<32x32xbf16>, vector<16x32xf32> -> vector<16x32xf32>
    %9 = arith.addf %3, %8 : vector<16x32xf32>
    %c0_6 = arith.constant 0 : index
    %c0_7 = arith.constant 0 : index
    %10 = vector.load %arg7[%c0_6, %c0_7] : memref<16x32xf32, #tpu.memory_space<vmem>>, vector<16x32xf32>
    tpu.vector_store %arg7[%c0_6, %c0_7], %9 {strides = array<i32>} : memref<16x32xf32, #tpu.memory_space<vmem>>, vector<16x32xf32>,
    %c0_i32_8 = arith.constant 0 : i32
    %11 = arith.cmpi eq, %arg2, %c0_i32_8 : i32
    %12 = arith.extui %11 : i1 to i32
    %c0_i32_9 = arith.constant 0 : i32
    %13 = arith.cmpi ne, %12, %c0_i32_9 : i32
    scf.if %13 {
      %c0_10 = arith.constant 0 : index
      %c0_11 = arith.constant 0 : index
      %14 = vector.load %arg7[%c0_10, %c0_11] : memref<16x32xf32, #tpu.memory_space<vmem>>, vector<16x32xf32>
      %15 = arith.truncf %14 : vector<16x32xf32> to vector<16x32xbf16>
      %c0_12 = arith.constant 0 : index
      %c0_13 = arith.constant 0 : index
      %16 = vector.load %arg6[%c0_12, %c0_13] : memref<16x32xbf16, #tpu.memory_space<vmem>>, vector<16x32xbf16>
      tpu.vector_store %arg6[%c0_12, %c0_13], %15 {strides = array<i32>} : memref<16x32xbf16, #tpu.memory_space<vmem>>, vector<16x32xbf16>,
    } else {
    }
    return
  }
  func.func @transform_0(%arg0: i32, %arg1: i32, %arg2: i32) -> (i32, i32) {
    %c0_i32 = arith.constant 0 : i32
    return %arg0, %arg2 : i32, i32
  }
  func.func @transform_1(%arg0: i32, %arg1: i32, %arg2: i32) -> (i32, i32) {
    %c0_i32 = arith.constant 0 : i32
    return %arg2, %arg1 : i32, i32
  }
  func.func @transform_2(%arg0: i32, %arg1: i32, %arg2: i32) -> (i32, i32) {
    %c0_i32 = arith.constant 0 : i32
    %c0_i32_0 = arith.constant 0 : i32
    return %c0_i32, %arg1 : i32, i32
  }
  func.func @transform_3(%arg0: i32, %arg1: i32, %arg2: i32) -> (i32, i32) {
    %c0_i32 = arith.constant 0 : i32
    return %arg0, %arg1 : i32, i32
  }
}

</mosaic_0001>

<llo_original>
// kernel: tpu_custom_call.1
$region0: #{tpu_custom_call.1}
  #allocation0 [shape = 'u32[]', space=smem, size = 0x4, offset = 0x4, fixed_abs, tag = 'smem constant byte address 0x4 - core index']
  #allocation1 [shape = 'u32[144,128]{1,0:T(1,128)}', space=vmem, size = 0x12000, scoped, tag = 'internal scratch']
  #allocation2 [shape = 'f32[16,32]{1,0:T(8,128)}', space=vmem, size = 0x2000, scoped, tag = 'scratch operand']
  %s0 = inlined_call_operand.hbm [shape: f32[16,32], index: 0, kind: input, shape index: {}]
  %s1 = inlined_call_operand.hbm [shape: f32[32,32], index: 1, kind: input, shape index: {}]
  %s2 = inlined_call_operand.hbm [shape: f32[1,32], index: 2, kind: input, shape index: {}]
  %s3 = inlined_call_operand.hbm [shape: bf16[16,32], index: 3, kind: output, shape index: {}]
  %s4 = sld [smem:[#allocation0]]
  $region42: #{tpu_custom_call.1} parent=0
    _
  %s6 = ssub.s32 1, %s4
  %s7 = scalar_select 0, %s6, %s4
  $region1: #{tpu_custom_call.1} parent=0
    #allocation3 [shape = 'u8[8192]{0}', space=vmem, size = 0x2000, scoped, tag = 'input window, operand 0, single buffered']
    #allocation4 [shape = 's32[1]{0}', space=sflag, size = 0x4, scoped, tag = 'scoped memory for tpu_custom_call.1']
    #allocation5 [shape = 's32[1]{0}', space=sflag, size = 0x4, scoped, tag = 'scoped memory for tpu_custom_call.1']
    #allocation6 [shape = 'u8[16384]{0}', space=vmem, size = 0x4000, scoped, tag = 'input window, operand 1, single buffered']
    #allocation7 [shape = 's32[1]{0}', space=sflag, size = 0x4, scoped, tag = 'scoped memory for tpu_custom_call.1']
    #allocation8 [shape = 'u8[512]{0}', space=vmem, size = 0x400, scoped, tag = 'input window, operand 2, single buffered']
    #allocation9 [shape = 'u8[4096]{0}', space=vmem, size = 0x1000, scoped, tag = 'output window, operand 0, single buffered']
    %8 = vsyncpa [#allocation4], 0
    %9 = vsyncpa [#allocation7], 0
    %10 = vsyncpa [#allocation5], 0
    // Predicated region
    $region2: #{tpu_custom_call.1} parent=1 // pred_check
      _
    $region3: #{tpu_custom_call.1} parent=1 // pred_check_branch
      %12 = sbr.rel (0) target = $region5
    $region4: #{tpu_custom_call.1} parent=1 // pred_region
      %s14 = ssub.s32 256, 256
      %15 = vsyncadd [#allocation4], %s14
      %s16 = sshll.u32 [#allocation3], 4
      %s17 = int_to_ptr.vmem [resolvable:$true] %s16
      %22 = dma.hbm_to_vmem [thread:$0]  %s0, 256, %s17, [#allocation4], 128, 128, 8
    $region5: #{tpu_custom_call.1} parent=1 // pred_fallthru
      _
    // Predicated region
    $region6: #{tpu_custom_call.1} parent=1 // pred_check
      _
    $region7: #{tpu_custom_call.1} parent=1 // pred_check_branch
      %24 = sbr.rel (0) target = $region9
    $region8: #{tpu_custom_call.1} parent=1 // pred_region
      %s26 = ssub.s32 512, 512
      %27 = vsyncadd [#allocation7], %s26
      %s28 = sshll.u32 [#allocation6], 4
      %s29 = int_to_ptr.vmem [resolvable:$true] %s28
      %34 = dma.hbm_to_vmem [thread:$0]  %s1, 512, %s29, [#allocation7], 128, 128, 8
    $region9: #{tpu_custom_call.1} parent=1 // pred_fallthru
      _
    // Predicated region
    $region10: #{tpu_custom_call.1} parent=1 // pred_check
      _
    $region11: #{tpu_custom_call.1} parent=1 // pred_check_branch
      %36 = sbr.rel (0) target = $region13
    $region12: #{tpu_custom_call.1} parent=1 // pred_region
      %s38 = ssub.s32 16, 16
      %39 = vsyncadd [#allocation7], %s38
      %s41 = sshll.u32 [#allocation8], 4
      %s42 = int_to_ptr.vmem [resolvable:$true] %s41
      %44 = dma.hbm_to_vmem [thread:$0]  %s2, 16, %s42, [#allocation7]
    $region13: #{tpu_custom_call.1} parent=1 // pred_fallthru
      _
    // Predicated region
    $region14: #{tpu_custom_call.1} parent=1 // pred_check
      _
    $region15: #{tpu_custom_call.1} parent=1 // pred_check_branch
      %46 = sbr.rel (0) target = $region17
    $region16: #{tpu_custom_call.1} parent=1 // pred_region
      %47 = dma.done [#allocation4], 256
    $region17: #{tpu_custom_call.1} parent=1 // pred_fallthru
      _
    // Predicated region
    $region18: #{tpu_custom_call.1} parent=1 // pred_check
      _
    $region19: #{tpu_custom_call.1} parent=1 // pred_check_branch
      %49 = sbr.rel (0) target = $region21
    $region20: #{tpu_custom_call.1} parent=1 // pred_region
      %50 = dma.done [#allocation7], 512
    $region21: #{tpu_custom_call.1} parent=1 // pred_fallthru
      _
    // Predicated region
    $region22: #{tpu_custom_call.1} parent=1 // pred_check
      _
    $region23: #{tpu_custom_call.1} parent=1 // pred_check_branch
      %52 = sbr.rel (0) target = $region25
    $region24: #{tpu_custom_call.1} parent=1 // pred_region
      %53 = dma.done [#allocation7], 16
    $region25: #{tpu_custom_call.1} parent=1 // pred_fallthru
      _
    %p55 = scmp.eq.s32.totalorder 0, 0
    // Predicated region
    $region26: #{tpu_custom_call.1} parent=1 // pred_check
      %p56 = pneg %p55
    $region27: #{tpu_custom_call.1} parent=1 // pred_check_branch
      %58 = sbr.rel (%p56) target = $region29
    $region28: #{tpu_custom_call.1} parent=1 // pred_region
      %v59 = vld [vmem:[#allocation8] sm:$0x1]
      %v61 = vlaneseq
      %v62 = vshrl.u32 %v61, 7
      %v63 = vsub.s32 0, %v62
      %v64 = vrot.slane %v59, %v63
      %vm66 = vcmask 261120
      %67 = vst.msk [vmem:[#allocation2] sm:$0xff] %vm66, %v64
      %68 = vst.msk [vmem:[#allocation2 + $0x8] sm:$0xff] %vm66, %v64
    $region29: #{tpu_custom_call.1} parent=1 // pred_fallthru
      _
    %v69 = vld [vmem:[#allocation2] sm:$0xff]
    %v70 = vld [vmem:[#allocation2 + $0x8] sm:$0xff]
    %v71 = vld [vmem:[#allocation3] sm:$0xff]
    %v72 = vld [vmem:[#allocation3 + $0x8] sm:$0xff]
    %v73 = vpack.c.bf16 %v72, %v71
    %v74 = vld [vmem:[#allocation6] sm:$0xff]
    %v75 = vld [vmem:[#allocation6 + $0x8] sm:$0xff]
    %v76 = vld [vmem:[#allocation6 + $0x10] sm:$0xff]
    %v77 = vld [vmem:[#allocation6 + $0x18] sm:$0xff]
    %v78 = vpack.c.bf16 %v75, %v74
    %v79 = vpack.c.bf16 %v77, %v76
    %vm80 = vcmask 261120
    %v82 = vsel %vm80, %v73, 0
    %84 = vmatprep.subr.bf16.mxu0 0
    %85 = vmatpush1.bf16.msra.mxu0 %v78
    %86 = vmatprep.subr.bf16.mxu0 0
    %87 = vmatpush1.bf16.msra.mxu0 %v79
    %88 = vmatprep.subr.bf16.mxu0 0
    %89 = vmatpush1.bf16.msra.mxu0 0
    %90 = vmatprep.subr.bf16.mxu0 0
    %91 = vmatpush1.bf16.msra.mxu0 0
    %92 = vmatprep.subr.bf16.mxu0 0
    %93 = vmatpush1.bf16.msra.mxu0 0
    %94 = vmatprep.subr.bf16.mxu0 0
    %95 = vmatpush1.bf16.msra.mxu0 0
    %96 = vmatprep.subr.bf16.mxu0 0
    %97 = vmatpush1.bf16.msra.mxu0 0
    %98 = vmatprep.subr.bf16.mxu0 0
    %99 = vmatpush1.bf16.msra.mxu0 0
    %100 = vmatprep.subr.bf16.mxu0 0
    %101 = vmatpush1.bf16.msra.mxu0 0
    %102 = vmatprep.subr.bf16.mxu0 0
    %103 = vmatpush1.bf16.msra.mxu0 0
    %104 = vmatprep.subr.bf16.mxu0 0
    %105 = vmatpush1.bf16.msra.mxu0 0
    %106 = vmatprep.subr.bf16.mxu0 0
    %107 = vmatpush1.bf16.msra.mxu0 0
    %108 = vmatprep.subr.bf16.mxu0 0
    %109 = vmatpush1.bf16.msra.mxu0 0
    %110 = vmatprep.subr.bf16.mxu0 0
    %111 = vmatpush1.bf16.msra.mxu0 0
    %112 = vmatprep.subr.bf16.mxu0 0
    %113 = vmatpush1.bf16.msra.mxu0 0
    %114 = vmatprep.subr.bf16.mxu0 0
    %115 = vmatpush1.bf16.msra.mxu0 0
    %116 = vmatprep.mubr.bf16.mxu0 0
    %117 = vmatmul.mubr.bf16.gmra.mrb[0].mxu0 %v82
    %v118 = vpop.f32.mrb[0].mxu0
    %v119 = vadd.f32 0.0, %v118
    %v120 = vpop.f32.mrb[0].mxu0
    %v121 = vpop.f32.mrb[0].mxu0
    %v122 = vadd.f32 0.0, %v121
    %v123 = vpop.f32.mrb[0].mxu0
    %124 = vdwg.mxu0
    %v125 = vadd.f32 %v69, %v119
    %v126 = vadd.f32 %v70, %v122
    %127 = vst.msk [vmem:[#allocation2] sm:$0xff] %vm80, %v125
    %128 = vst.msk [vmem:[#allocation2 + $0x8] sm:$0xff] %vm80, %v126
    // Predicated region
    $region30: #{tpu_custom_call.1} parent=1 // pred_check
      %p129 = pneg %p55
    $region31: #{tpu_custom_call.1} parent=1 // pred_check_branch
      %131 = sbr.rel (%p129) target = $region33
    $region32: #{tpu_custom_call.1} parent=1 // pred_region
      %v132 = vld [vmem:[#allocation2] sm:$0xff]
      %v133 = vld [vmem:[#allocation2 + $0x8] sm:$0xff]
      %v134 = vpack.c.bf16 %v133, %v132
      %v136 = vunpack.c.l.b16 %v134
      %v137 = vunpack.c.h.b16 %v134
      %v138 = vpack.c.b16 %v136, %v136
      %v139 = vpack.c.b16 %v137, %v137
      %vm142 = vcmask 257024
      %143 = vst.msk [vmem:[#allocation9] sm:$0xf] %vm142, %v138
      %144 = vst.msk [vmem:[#allocation9 + $0x4] sm:$0xf] %vm142, %v139
    $region33: #{tpu_custom_call.1} parent=1 // pred_fallthru
      _
    // Predicated region
    $region34: #{tpu_custom_call.1} parent=1 // pred_check
      _
    $region35: #{tpu_custom_call.1} parent=1 // pred_check_branch
      %146 = sbr.rel (0) target = $region37
    $region36: #{tpu_custom_call.1} parent=1 // pred_region
      %s148 = ssub.s32 128, 128
      %149 = vsyncadd [#allocation5], %s148
      %s150 = sshll.u32 [#allocation9], 4
      %s151 = int_to_ptr.vmem [resolvable:$true] %s150
      %156 = dma.vmem_to_hbm [thread:$0]  %s151, 128, %s3, [#allocation5], 64, 64, 4
    $region37: #{tpu_custom_call.1} parent=1 // pred_fallthru
      _
    // Predicated region
    $region38: #{tpu_custom_call.1} parent=1 // pred_check
      _
    $region39: #{tpu_custom_call.1} parent=1 // pred_check_branch
      %158 = sbr.rel (0) target = $region41
    $region40: #{tpu_custom_call.1} parent=1 // pred_region
      %159 = dma.done [#allocation5], 128
    $region41: #{tpu_custom_call.1} parent=1 // pred_fallthru
      _
    %160 = vsyncpa [#allocation4], 1
    %161 = vsyncpa [#allocation7], 1
    %162 = vsyncpa [#allocation5], 1

</llo_original>
